<compile_context>
chip_gen: v7x
topology: tpu7x:2x2x1
jax: 0.10.0
libtpu: 0.0.40
codegen_flags: <defaults>
</compile_context>

<pallas_src>
import functools
import math

import jax
import jax.numpy as jnp
from jax.experimental import pallas as pl
from jax.experimental.pallas import tpu as pltpu


def _round_up(n: int, m: int) -> int:
    return ((n + m - 1) // m) * m


def _pick_tm(batch: int) -> int:
    # Prefer large batch tiles (amortize ~0.35us/step + DMA latency) but keep
    # >= 2 grid steps so the "parallel" batch axis feeds both v7x TensorCores.
    for tm in (512, 256, 128):
        if _round_up(batch, tm) // tm >= 2:
            return tm
    return 128


def _make_mlp_kernel(out_pads):
    """Fused affine-chain kernel; out_pads = per-layer padded output widths."""
    num_layers = len(out_pads)

    def kernel(x_ref, b_ref, *rest):
        w_refs = rest[:num_layers]
        o_ref = rest[num_layers]
        h = x_ref[...]                                   # (TM, in_pad) bf16
        for i in range(num_layers):                      # unrolled at trace time
            w = w_refs[i][...]                           # (in_pad_i, out_pad_i) bf16
            b = b_ref[i:i + 1, :out_pads[i]]             # (1, out_pad_i) f32, static slice
            h32 = jnp.dot(h, w, preferred_element_type=jnp.float32) + b
            if i + 1 < num_layers:
                h = h32.astype(jnp.bfloat16)             # bf16 MXU operand for next layer
            else:
                o_ref[...] = h32                         # only final padded lanes hit HBM

    return kernel


def pack_params(params):
    """One-time packing/padding of (w, b) pairs — hoisted off the per-call path.

    Each layer is padded to its own round_up(fan_in,128) x round_up(fan_out,128)
    bf16 slab (ragged packing); biases become one 2-D f32 (L, max_out_pad) slab.
    """
    num_layers = len(params)
    in_pads = [_round_up(w.shape[0], 128) for w, _ in params]
    out_pads = [_round_up(w.shape[1], 128) for w, _ in params]
    for i in range(num_layers - 1):
        assert in_pads[i + 1] == out_pads[i], "layer sizes must chain"

    weights = []
    for (w, _), fi_pad, fo_pad in zip(params, in_pads, out_pads):
        fi, fo = w.shape
        w_p = jnp.zeros((fi_pad, fo_pad), jnp.bfloat16).at[:fi, :fo].set(
            w.astype(jnp.bfloat16))
        weights.append(w_p)

    max_out = max(out_pads)
    b_stack = jnp.zeros((num_layers, max_out), jnp.float32)
    for i, (_, b) in enumerate(params):
        b_stack = b_stack.at[i, : b.shape[0]].set(b.astype(jnp.float32))

    out_dim = params[-1][0].shape[1]
    return tuple(weights), b_stack, out_dim


@functools.partial(jax.jit, static_argnames=("out_dim", "tm"))
def mlp_forward(x, weights, b_stack, *, out_dim, tm=None):
    """Run the fused MLP Pallas kernel on pre-packed parameters.

    Args:
      x: (batch, fan_in_0) float32.
      weights: tuple of per-layer padded bf16 (in_pad, out_pad) arrays.
      b_stack: (L, max_out_pad) float32 bias slab.
      out_dim: true (unpadded) output width — static.
      tm: optional batch tile override — static.
    Returns:
      (batch, out_dim) float32.
    """
    num_layers = len(weights)
    batch, in0 = x.shape
    in_pad = weights[0].shape[0]
    out_pads = tuple(int(w.shape[1]) for w in weights)
    out_last_pad = out_pads[-1]

    if tm is None:
        tm = _pick_tm(batch)
    b_pad = _round_up(batch, tm)

    # Per-call host-side work is only padding/casting the activations.
    x_pad = jnp.pad(x.astype(jnp.bfloat16), ((0, b_pad - batch), (0, in_pad - in0)))

    # Weights / biases are grid-invariant: single-buffered, DMA'd once, resident.
    resident = pl.Buffered(buffer_count=1)
    w_specs = [
        pl.BlockSpec(w.shape, lambda i: (0, 0), pipeline_mode=resident)
        for w in weights
    ]
    b_spec = pl.BlockSpec(b_stack.shape, lambda i: (0, 0), pipeline_mode=resident)

    # Only set a VMEM limit when the real footprint exceeds the default scoped
    # limit (v5e is 16 MiB); size it from the actual single-buffered weights +
    # double-buffered activation tiles with headroom.
    w_bytes = sum(math.prod(w.shape) * 2 for w in weights)          # bf16, 1 buffer each
    act_bytes = 2 * tm * in_pad * 2 + 2 * tm * out_last_pad * 4     # dbl-buffered x / out
    footprint = w_bytes + b_stack.size * 4 + act_bytes
    extra = {}
    if footprint > (12 << 20):
        extra["vmem_limit_bytes"] = min(int(footprint * 1.5) + (4 << 20), 100 << 20)

    out = pl.pallas_call(
        _make_mlp_kernel(out_pads),
        out_shape=jax.ShapeDtypeStruct((b_pad, out_last_pad), jnp.float32),
        grid=(b_pad // tm,),
        in_specs=[
            pl.BlockSpec((tm, in_pad), lambda i: (i, 0)),   # activations stream per step
            b_spec,
            *w_specs,
        ],
        out_specs=pl.BlockSpec((tm, out_last_pad), lambda i: (i, 0)),
        compiler_params=pltpu.CompilerParams(
            dimension_semantics=("parallel",), **extra),
    )(x_pad, b_stack, *weights)

    # Strip batch / feature padding.
    return out[:batch, :out_dim]


def init_params(key, layer_sizes):
    """Deterministic init mirroring torch.nn.Linear default (U[-1/sqrt(fan_in), +])."""
    params = []
    for i in range(len(layer_sizes) - 1):
        fan_in, fan_out = layer_sizes[i], layer_sizes[i + 1]
        key, kw, kb = jax.random.split(key, 3)
        bound = 1.0 / jnp.sqrt(jnp.float32(fan_in))
        # Stored as (in, out) == transpose of torch's (out, in) weight.
        w = jax.random.uniform(kw, (fan_in, fan_out), jnp.float32, -bound, bound)
        b = jax.random.uniform(kb, (fan_out,), jnp.float32, -bound, bound)
        params.append((w, b))
    return params


def mlp_reference(x, params):
    """Reference mirroring the kernel's numerics (bf16 operands, f32 accumulation)."""
    h = x
    for w, b in params:
        h = jnp.dot(h.astype(jnp.bfloat16).astype(jnp.float32),
                    w.astype(jnp.bfloat16).astype(jnp.float32),
                    precision=jax.lax.Precision.HIGHEST) + b
    return h


if __name__ == "__main__":
    key = jax.random.PRNGKey(0)
    layer_sizes = [32, 64, 128, 16]
    input_size = layer_sizes[0]  # unused by the torch module's forward; kept for parity
    batch = 256                  # -> tm=128, two grid steps (both TCs busy on v7x)

    key, kx = jax.random.split(key)
    x = jax.random.normal(kx, (batch, layer_sizes[0]), dtype=jnp.float32)
    params = init_params(key, layer_sizes)

    # Pack/pad parameters ONCE; every forward call only pads the activations.
    weights, b_stack, out_dim = pack_params(params)

    out = jax.block_until_ready(mlp_forward(x, weights, b_stack, out_dim=out_dim))
    ref = mlp_reference(x, params)

    assert out.shape == (batch, layer_sizes[-1])
    assert jnp.allclose(out, ref, atol=2e-3, rtol=2e-3), "mismatch vs JAX reference"

    print("KERNEL_OK")
</pallas_src>

<mosaic_0001>
module attributes {stable_mosaic.version = 11 : i64} {
  func.func @kernel(%arg0: i32, %arg1: memref<128x128xbf16, #tpu.memory_space<vmem>>, %arg2: memref<3x128xf32, #tpu.memory_space<vmem>>, %arg3: memref<128x128xbf16, #tpu.memory_space<vmem>>, %arg4: memref<128x128xbf16, #tpu.memory_space<vmem>>, %arg5: memref<128x128xbf16, #tpu.memory_space<vmem>>, %arg6: memref<128x128xf32, #tpu.memory_space<vmem>>) attributes {dimension_semantics = [#tpu.dimension_semantics<parallel>], iteration_bounds = array<i64: 2>, scalar_prefetch = 0 : i64, scratch_operands = 0 : i64, tpu.core_type = #tpu.core_type<tc>, window_params = [{transform_indices = @transform_0, window_bounds = array<i64: 128, 128>}, {pipeline_mode = #tpu.pipeline_mode<synchronous>, transform_indices = @transform_1, window_bounds = array<i64: 3, 128>}, {pipeline_mode = #tpu.pipeline_mode<synchronous>, transform_indices = @transform_2, window_bounds = array<i64: 128, 128>}, {pipeline_mode = #tpu.pipeline_mode<synchronous>, transform_indices = @transform_3, window_bounds = array<i64: 128, 128>}, {pipeline_mode = #tpu.pipeline_mode<synchronous>, transform_indices = @transform_4, window_bounds = array<i64: 128, 128>}, {transform_indices = @transform_5, window_bounds = array<i64: 128, 128>}]} {
    %c0 = arith.constant 0 : index
    %c0_0 = arith.constant 0 : index
    %0 = vector.load %arg1[%c0, %c0_0] : memref<128x128xbf16, #tpu.memory_space<vmem>>, vector<128x128xbf16>
    %c0_1 = arith.constant 0 : index
    %c0_2 = arith.constant 0 : index
    %1 = vector.load %arg3[%c0_1, %c0_2] : memref<128x128xbf16, #tpu.memory_space<vmem>>, vector<128x128xbf16>
    %c0_3 = arith.constant 0 : index
    %c0_4 = arith.constant 0 : index
    %2 = vector.load %arg2[%c0_3, %c0_4] : memref<3x128xf32, #tpu.memory_space<vmem>>, vector<1x128xf32>
    %cst = arith.constant dense<0.000000e+00> : vector<128x128xf32>
    %3 = tpu.matmul %0, %1, %cst {dimension_numbers = #tpu.dot_dimension_numbers<[1], [0], [0], [1], [0, 0, 1, 1], [], []>} : vector<128x128xbf16>, vector<128x128xbf16>, vector<128x128xf32> -> vector<128x128xf32>
    %4 = vector.broadcast %2 : vector<1x128xf32> to vector<128x128xf32>
    %5 = arith.addf %3, %4 : vector<128x128xf32>
    %6 = arith.truncf %5 : vector<128x128xf32> to vector<128x128xbf16>
    %c0_5 = arith.constant 0 : index
    %c0_6 = arith.constant 0 : index
    %7 = vector.load %arg4[%c0_5, %c0_6] : memref<128x128xbf16, #tpu.memory_space<vmem>>, vector<128x128xbf16>
    %c1 = arith.constant 1 : index
    %c0_7 = arith.constant 0 : index
    %8 = vector.load %arg2[%c1, %c0_7] : memref<3x128xf32, #tpu.memory_space<vmem>>, vector<1x128xf32>
    %cst_8 = arith.constant dense<0.000000e+00> : vector<128x128xf32>
    %9 = tpu.matmul %6, %7, %cst_8 {dimension_numbers = #tpu.dot_dimension_numbers<[1], [0], [0], [1], [0, 0, 1, 1], [], []>} : vector<128x128xbf16>, vector<128x128xbf16>, vector<128x128xf32> -> vector<128x128xf32>
    %10 = vector.broadcast %8 : vector<1x128xf32> to vector<128x128xf32>
    %11 = arith.addf %9, %10 : vector<128x128xf32>
    %12 = arith.truncf %11 : vector<128x128xf32> to vector<128x128xbf16>
    %c0_9 = arith.constant 0 : index
    %c0_10 = arith.constant 0 : index
    %13 = vector.load %arg5[%c0_9, %c0_10] : memref<128x128xbf16, #tpu.memory_space<vmem>>, vector<128x128xbf16>
    %c2 = arith.constant 2 : index
    %c0_11 = arith.constant 0 : index
    %14 = vector.load %arg2[%c2, %c0_11] : memref<3x128xf32, #tpu.memory_space<vmem>>, vector<1x128xf32>
    %cst_12 = arith.constant dense<0.000000e+00> : vector<128x128xf32>
    %15 = tpu.matmul %12, %13, %cst_12 {dimension_numbers = #tpu.dot_dimension_numbers<[1], [0], [0], [1], [0, 0, 1, 1], [], []>} : vector<128x128xbf16>, vector<128x128xbf16>, vector<128x128xf32> -> vector<128x128xf32>
    %16 = vector.broadcast %14 : vector<1x128xf32> to vector<128x128xf32>
    %17 = arith.addf %15, %16 : vector<128x128xf32>
    %c0_13 = arith.constant 0 : index
    %c0_14 = arith.constant 0 : index
    %18 = vector.load %arg6[%c0_13, %c0_14] : memref<128x128xf32, #tpu.memory_space<vmem>>, vector<128x128xf32>
    tpu.vector_store %arg6[%c0_13, %c0_14], %17 {strides = array<i32>} : memref<128x128xf32, #tpu.memory_space<vmem>>, vector<128x128xf32>,
    return
  }
  func.func @transform_0(%arg0: i32) -> (i32, i32) {
    %c0_i32 = arith.constant 0 : i32
    %c0_i32_0 = arith.constant 0 : i32
    return %arg0, %c0_i32 : i32, i32
  }
  func.func @transform_1(%arg0: i32) -> (i32, i32) {
    %c0_i32 = arith.constant 0 : i32
    %c0_i32_0 = arith.constant 0 : i32
    %c0_i32_1 = arith.constant 0 : i32
    return %c0_i32, %c0_i32_0 : i32, i32
  }
  func.func @transform_2(%arg0: i32) -> (i32, i32) {
    %c0_i32 = arith.constant 0 : i32
    %c0_i32_0 = arith.constant 0 : i32
    %c0_i32_1 = arith.constant 0 : i32
    return %c0_i32, %c0_i32_0 : i32, i32
  }
  func.func @transform_3(%arg0: i32) -> (i32, i32) {
    %c0_i32 = arith.constant 0 : i32
    %c0_i32_0 = arith.constant 0 : i32
    %c0_i32_1 = arith.constant 0 : i32
    return %c0_i32, %c0_i32_0 : i32, i32
  }
  func.func @transform_4(%arg0: i32) -> (i32, i32) {
    %c0_i32 = arith.constant 0 : i32
    %c0_i32_0 = arith.constant 0 : i32
    %c0_i32_1 = arith.constant 0 : i32
    return %c0_i32, %c0_i32_0 : i32, i32
  }
  func.func @transform_5(%arg0: i32) -> (i32, i32) {
    %c0_i32 = arith.constant 0 : i32
    %c0_i32_0 = arith.constant 0 : i32
    return %arg0, %c0_i32 : i32, i32
  }
}

</mosaic_0001>

<llo_original>
// kernel: mlp_forward.1
$region0: #{mlp_forward.1}
  #allocation0 [shape = 'u32[]', space=smem, size = 0x4, offset = 0x4, fixed_abs, tag = 'smem constant byte address 0x4 - core index']
  #allocation1 [shape = 'u32[144,128]{1,0:T(1,128)}', space=vmem, size = 0x12000, scoped, tag = 'internal scratch']
  %s0 = inlined_call_operand.vmem [shape: bf16[256,128], index: 0, kind: input, shape index: {}]
  %s1 = inlined_call_operand.vmem [shape: f32[3,128], index: 1, kind: input, shape index: {}]
  %s2 = inlined_call_operand.vmem [shape: bf16[128,128], index: 2, kind: input, shape index: {}]
  %s3 = inlined_call_operand.vmem [shape: bf16[128,128], index: 3, kind: input, shape index: {}]
  %s4 = inlined_call_operand.vmem [shape: bf16[128,128], index: 4, kind: input, shape index: {}]
  %s5 = inlined_call_operand.vmem [shape: f32[256,128], index: 5, kind: output, shape index: {}]
  %s6 = sld [smem:[#allocation0]]
  $region53: #{mlp_forward.1} parent=0
    _
  %s8 = ssub.s32 1, %s6
  %s9 = scalar_select 0, %s8, %s6
  loop: start=0, step=1, limit=4
  $region2: #{mlp_forward.1} parent=0 // loop_pre_header
    _
  $region3: #{mlp_forward.1} parent=0 // loop_header
    %s11 = sphi 0, %s15
    %p12 = scmp.ge.s32.totalorder %s11, 4
    %s21 = sphi 0, %s23
    %s24 = sphi 0, %s21
    %s25 = sphi 0, %s24
    %s41 = sphi 0, %s25
    %s45 = sphi 0, %s45
    %s47 = sphi 0, %s45
    %s48 = sphi 0, %s47
    %s62 = sphi 0, %s48
    %s66 = sphi 0, %s66
    %s68 = sphi 0, %s66
    %s69 = sphi 0, %s68
    %s83 = sphi 0, %s69
    %s87 = sphi 0, %s87
    %s89 = sphi 0, %s87
    %s90 = sphi 0, %s89
    %s104 = sphi 0, %s90
    %s108 = sphi 0, %s108
    %s110 = sphi 0, %s108
    %s111 = sphi 0, %s110
    %s125 = sphi 0, %s111
    %s131 = sphi 0, %s133
    %s134 = sphi 0, %s131
    %s135 = sphi 0, %s134
    %s151 = sphi 0, %s135
  $region4: #{mlp_forward.1} parent=0 // loop_header_branch
    %14 = sbr.rel (%p12) target = $region8
  $region5: #{mlp_forward.1} parent=0 // loop_body
    %s16 = ssub.s32 %s11, 1
    %s17 = ssub.s32 %s11, 2
    %s18 = sadd.s32 %s11, 1
    %s19 = ssub.s32 %s11, %s18
    %p20 = scmp.eq.s32.totalorder %s19, 0
    %s22 = sadd.s32 %s21, 1
    %s23 = scalar_select %p20, %s21, %s22
    %p26 = pneg %p20
    %p27 = scmp.eq.s32.totalorder %s11, 1
    %p28 = por %p26, %p27
    %p29 = scmp.ne.s32.totalorder %s21, %s24
    %p30 = scmp.eq.s32.totalorder %s11, 0
    %p31 = por %p29, %p30
    %p32 = scmp.ne.s32.totalorder %s21, %s24
    %p33 = scmp.eq.s32.totalorder %s16, 1
    %p34 = por %p32, %p33
    %p35 = scmp.ne.s32.totalorder %s24, %s25
    %p36 = scmp.eq.s32.totalorder %s16, 0
    %p37 = por %p35, %p36
    %p38 = scmp.ne.s32.totalorder %s24, %s25
    %p39 = scmp.eq.s32.totalorder %s17, 1
    %p40 = por %p38, %p39
    %p42 = scmp.ne.s32.totalorder %s25, %s41
    %p43 = scmp.eq.s32.totalorder %s17, 0
    %p44 = por %p42, %p43
    %s46 = sadd.s32 %s45, 1
    %p49 = scmp.eq.s32.totalorder %s11, 1
    %p50 = scmp.ne.s32.totalorder %s45, %s47
    %p51 = scmp.eq.s32.totalorder %s11, 0
    %p52 = por %p50, %p51
    %p53 = scmp.ne.s32.totalorder %s45, %s47
    %p54 = scmp.eq.s32.totalorder %s16, 1
    %p55 = por %p53, %p54
    %p56 = scmp.ne.s32.totalorder %s47, %s48
    %p57 = scmp.eq.s32.totalorder %s16, 0
    %p58 = por %p56, %p57
    %p59 = scmp.ne.s32.totalorder %s47, %s48
    %p60 = scmp.eq.s32.totalorder %s17, 1
    %p61 = por %p59, %p60
    %p63 = scmp.ne.s32.totalorder %s48, %s62
    %p64 = scmp.eq.s32.totalorder %s17, 0
    %p65 = por %p63, %p64
    %s67 = sadd.s32 %s66, 1
    %p70 = scmp.eq.s32.totalorder %s11, 1
    %p71 = scmp.ne.s32.totalorder %s66, %s68
    %p72 = scmp.eq.s32.totalorder %s11, 0
    %p73 = por %p71, %p72
    %p74 = scmp.ne.s32.totalorder %s66, %s68
    %p75 = scmp.eq.s32.totalorder %s16, 1
    %p76 = por %p74, %p75
    %p77 = scmp.ne.s32.totalorder %s68, %s69
    %p78 = scmp.eq.s32.totalorder %s16, 0
    %p79 = por %p77, %p78
    %p80 = scmp.ne.s32.totalorder %s68, %s69
    %p81 = scmp.eq.s32.totalorder %s17, 1
    %p82 = por %p80, %p81
    %p84 = scmp.ne.s32.totalorder %s69, %s83
    %p85 = scmp.eq.s32.totalorder %s17, 0
    %p86 = por %p84, %p85
    %s88 = sadd.s32 %s87, 1
    %p91 = scmp.eq.s32.totalorder %s11, 1
    %p92 = scmp.ne.s32.totalorder %s87, %s89
    %p93 = scmp.eq.s32.totalorder %s11, 0
    %p94 = por %p92, %p93
    %p95 = scmp.ne.s32.totalorder %s87, %s89
    %p96 = scmp.eq.s32.totalorder %s16, 1
    %p97 = por %p95, %p96
    %p98 = scmp.ne.s32.totalorder %s89, %s90
    %p99 = scmp.eq.s32.totalorder %s16, 0
    %p100 = por %p98, %p99
    %p101 = scmp.ne.s32.totalorder %s89, %s90
    %p102 = scmp.eq.s32.totalorder %s17, 1
    %p103 = por %p101, %p102
    %p105 = scmp.ne.s32.totalorder %s90, %s104
    %p106 = scmp.eq.s32.totalorder %s17, 0
    %p107 = por %p105, %p106
    %s109 = sadd.s32 %s108, 1
    %p112 = scmp.eq.s32.totalorder %s11, 1
    %p113 = scmp.ne.s32.totalorder %s108, %s110
    %p114 = scmp.eq.s32.totalorder %s11, 0
    %p115 = por %p113, %p114
    %p116 = scmp.ne.s32.totalorder %s108, %s110
    %p117 = scmp.eq.s32.totalorder %s16, 1
    %p118 = por %p116, %p117
    %p119 = scmp.ne.s32.totalorder %s110, %s111
    %p120 = scmp.eq.s32.totalorder %s16, 0
    %p121 = por %p119, %p120
    %p122 = scmp.ne.s32.totalorder %s110, %s111
    %p123 = scmp.eq.s32.totalorder %s17, 1
    %p124 = por %p122, %p123
    %p126 = scmp.ne.s32.totalorder %s111, %s125
    %p127 = scmp.eq.s32.totalorder %s17, 0
    %p128 = por %p126, %p127
    %s129 = ssub.s32 %s11, %s18
    %p130 = scmp.eq.s32.totalorder %s129, 0
    %s132 = sadd.s32 %s131, 1
    %s133 = scalar_select %p130, %s131, %s132
    %p136 = pneg %p130
    %p137 = scmp.eq.s32.totalorder %s11, 1
    %p138 = por %p136, %p137
    %p139 = scmp.ne.s32.totalorder %s131, %s134
    %p140 = scmp.eq.s32.totalorder %s11, 0
    %p141 = por %p139, %p140
    %p142 = scmp.ne.s32.totalorder %s131, %s134
    %p143 = scmp.eq.s32.totalorder %s16, 1
    %p144 = por %p142, %p143
    %p145 = scmp.ne.s32.totalorder %s134, %s135
    %p146 = scmp.eq.s32.totalorder %s16, 0
    %p147 = por %p145, %p146
    %p148 = scmp.ne.s32.totalorder %s134, %s135
    %p149 = scmp.eq.s32.totalorder %s17, 1
    %p150 = por %p148, %p149
    %p152 = scmp.ne.s32.totalorder %s135, %s151
    %p153 = scmp.eq.s32.totalorder %s17, 0
    %p154 = por %p152, %p153
    %p155 = scmp.le.s32.totalorder 1, %s11
    %p156 = scmp.lt.s32.totalorder %s11, 3
    %p157 = pnand %p155, %p156
    %p158 = pneg %p157
    // Predicated region
    $region9: #{mlp_forward.1} parent=5 // pred_check
      _
    $region10: #{mlp_forward.1} parent=5 // pred_check_branch
      %160 = sbr.rel (%p157) target = $region12
    $region11: #{mlp_forward.1} parent=5 // pred_region
      %s161 = ssub.s32 %s11, 1
      // Predicated region
      $region13: #{mlp_forward.1} parent=11 // pred_check
        %p162 = pneg %p58
      $region14: #{mlp_forward.1} parent=11 // pred_check_branch
        %164 = sbr.rel (%p162) target = $region16
      $region15: #{mlp_forward.1} parent=11 // pred_region
        _
      $region16: #{mlp_forward.1} parent=11 // pred_fallthru
        _
      // Predicated region
      $region17: #{mlp_forward.1} parent=11 // pred_check
        %p165 = pneg %p79
      $region18: #{mlp_forward.1} parent=11 // pred_check_branch
        %167 = sbr.rel (%p165) target = $region20
      $region19: #{mlp_forward.1} parent=11 // pred_region
        _
      $region20: #{mlp_forward.1} parent=11 // pred_fallthru
        _
      // Predicated region
      $region21: #{mlp_forward.1} parent=11 // pred_check
        %p168 = pneg %p100
      $region22: #{mlp_forward.1} parent=11 // pred_check_branch
        %170 = sbr.rel (%p168) target = $region24
      $region23: #{mlp_forward.1} parent=11 // pred_region
        _
      $region24: #{mlp_forward.1} parent=11 // pred_fallthru
        _
      // Predicated region
      $region25: #{mlp_forward.1} parent=11 // pred_check
        %p171 = pneg %p121
      $region26: #{mlp_forward.1} parent=11 // pred_check_branch
        %173 = sbr.rel (%p171) target = $region28
      $region27: #{mlp_forward.1} parent=11 // pred_region
        _
      $region28: #{mlp_forward.1} parent=11 // pred_fallthru
        _
    $region12: #{mlp_forward.1} parent=5 // pred_fallthru
      _
    %p174 = scmp.lt.s32.totalorder %s11, 2
    // Predicated region
    $region29: #{mlp_forward.1} parent=5 // pred_check
      %p175 = pneg %p174
    $region30: #{mlp_forward.1} parent=5 // pred_check_branch
      %177 = sbr.rel (%p175) target = $region32
    $region31: #{mlp_forward.1} parent=5 // pred_region
      // Predicated region
      $region33: #{mlp_forward.1} parent=31 // pred_check
        %p178 = pneg %p31
      $region34: #{mlp_forward.1} parent=31 // pred_check_branch
        %180 = sbr.rel (%p178) target = $region36
      $region35: #{mlp_forward.1} parent=31 // pred_region
        %s181 = smul.u32 16, %s11
        %p182 = scmp.lt.s32.totalorder %s181, 31
        %s183 = scalar_select %p182, %s181, 31
        %s184 = smul.addr %s183, 4
        %s185 = scalar_lea.vmem %s0, %s184
        %s186 = smul.u32 16, %s11
      $region36: #{mlp_forward.1} parent=31 // pred_fallthru
        _
    $region32: #{mlp_forward.1} parent=5 // pred_fallthru
      _
    %p187 = scmp.le.s32.totalorder 1, %s11
    %p188 = scmp.lt.s32.totalorder %s11, 3
    %p189 = pnand %p187, %p188
    %p190 = pneg %p189
    // Predicated region
    $region37: #{mlp_forward.1} parent=5 // pred_check
      _
    $region38: #{mlp_forward.1} parent=5 // pred_check_branch
      %192 = sbr.rel (%p189) target = $region40
    $region39: #{mlp_forward.1} parent=5 // pred_region
      %s193 = ssub.s32 %s11, 1
      %s194 = smul.u32 16, %s16
      %p195 = scmp.lt.s32.totalorder %s194, 31
      %s196 = scalar_select %p195, %s194, 31
      %s197 = smul.addr %s196, 4
      %s198 = scalar_lea.vmem %s0, %s197
      %p199 = pneg %p37
      %p200 = pneg %p34
      %p201 = pneg %p58
      %p202 = pneg %p55
      %p203 = pneg %p79
      %p204 = pneg %p76
      %p205 = pneg %p100
      %p206 = pneg %p97
      %p207 = pneg %p121
      %p208 = pneg %p118
      %p209 = pneg %p147
      %p210 = pneg %p144
      %s211 = smul.u32 16, %s16
      %p212 = scmp.lt.s32.totalorder %s211, 31
      %s213 = scalar_select %p212, %s211, 31
      %s214 = smul.addr %s213, 8
      %s215 = scalar_lea.vmem %s5, %s214
      %s216 = smul.u32 16, %s16
      %p217 = scmp.lt.s32.totalorder %s216, 31
      %s218 = scalar_select %p217, %s216, 31
      %s219 = smul.addr %s218, 4
      %s220 = scalar_lea.vmem %s0, %s219
      %s221 = smul.u32 16, %s16
      %s222 = smul.u32 16, %s16
      %p223 = scmp.lt.s32.totalorder %s222, 31
      %s224 = scalar_select %p223, %s222, 31
      %s225 = smul.addr %s224, 8
      %s226 = scalar_lea.vmem %s5, %s225
      %s227 = smul.u32 16, %s16
      %v229 = vld [vmem:[%s220] sm:$0xf]
      %v230 = vld [vmem:[%s220 + $0x4] sm:$0xf]
      %v231 = vld [vmem:[%s220 + $0x8] sm:$0xf]
      %v232 = vld [vmem:[%s220 + $0xc] sm:$0xf]
      %v233 = vld [vmem:[%s220 + $0x10] sm:$0xf]
      %v234 = vld [vmem:[%s220 + $0x14] sm:$0xf]
      %v235 = vld [vmem:[%s220 + $0x18] sm:$0xf]
      %v236 = vld [vmem:[%s220 + $0x1c] sm:$0xf]
      %v237 = vld [vmem:[%s220 + $0x20] sm:$0xf]
      %v238 = vld [vmem:[%s220 + $0x24] sm:$0xf]
      %v239 = vld [vmem:[%s220 + $0x28] sm:$0xf]
      %v240 = vld [vmem:[%s220 + $0x2c] sm:$0xf]
      %v241 = vld [vmem:[%s220 + $0x30] sm:$0xf]
      %v242 = vld [vmem:[%s220 + $0x34] sm:$0xf]
      %v243 = vld [vmem:[%s220 + $0x38] sm:$0xf]
      %v244 = vld [vmem:[%s220 + $0x3c] sm:$0xf]
      %v245 = vld [vmem:[%s2] sm:$0xf]
      %v246 = vld [vmem:[%s2 + $0x4] sm:$0xf]
      %v247 = vld [vmem:[%s2 + $0x8] sm:$0xf]
      %v248 = vld [vmem:[%s2 + $0xc] sm:$0xf]
      %v249 = vld [vmem:[%s2 + $0x10] sm:$0xf]
      %v250 = vld [vmem:[%s2 + $0x14] sm:$0xf]
      %v251 = vld [vmem:[%s2 + $0x18] sm:$0xf]
      %v252 = vld [vmem:[%s2 + $0x1c] sm:$0xf]
      %v253 = vld [vmem:[%s2 + $0x20] sm:$0xf]
      %v254 = vld [vmem:[%s2 + $0x24] sm:$0xf]
      %v255 = vld [vmem:[%s2 + $0x28] sm:$0xf]
      %v256 = vld [vmem:[%s2 + $0x2c] sm:$0xf]
      %v257 = vld [vmem:[%s2 + $0x30] sm:$0xf]
      %v258 = vld [vmem:[%s2 + $0x34] sm:$0xf]
      %v259 = vld [vmem:[%s2 + $0x38] sm:$0xf]
      %v260 = vld [vmem:[%s2 + $0x3c] sm:$0xf]
      %v261 = vld [vmem:[%s1] sm:$0x1]
      %v262 = vlaneseq
      %v263 = vshrl.u32 %v262, 7
      %v264 = vsub.s32 0, %v263
      %v265 = vrot.slane %v261, %v264
      %v282 = vunpack.c.l.b16 %v229
      %v283 = vunpack.c.l.b16 %v230
      %v284 = vunpack.c.l.b16 %v231
      %v285 = vunpack.c.l.b16 %v232
      %v286 = vunpack.c.l.b16 %v233
      %v287 = vunpack.c.l.b16 %v234
      %v288 = vunpack.c.l.b16 %v235
      %v289 = vunpack.c.l.b16 %v236
      %v290 = vunpack.c.l.b16 %v237
      %v291 = vunpack.c.l.b16 %v238
      %v292 = vunpack.c.l.b16 %v239
      %v293 = vunpack.c.l.b16 %v240
      %v294 = vunpack.c.l.b16 %v241
      %v295 = vunpack.c.l.b16 %v242
      %v296 = vunpack.c.l.b16 %v243
      %v297 = vunpack.c.l.b16 %v244
      %v298 = vpack.c.b16 %v283, %v282
      %v299 = vpack.c.b16 %v285, %v284
      %v300 = vpack.c.b16 %v287, %v286
      %v301 = vpack.c.b16 %v289, %v288
      %v302 = vpack.c.b16 %v291, %v290
      %v303 = vpack.c.b16 %v293, %v292
      %v304 = vpack.c.b16 %v295, %v294
      %v305 = vpack.c.b16 %v297, %v296
      %v330 = vunpack.c.l.b16 %v245
      %v331 = vunpack.c.l.b16 %v246
      %v332 = vunpack.c.l.b16 %v247
      %v333 = vunpack.c.l.b16 %v248
      %v334 = vunpack.c.l.b16 %v249
      %v335 = vunpack.c.l.b16 %v250
      %v336 = vunpack.c.l.b16 %v251
      %v337 = vunpack.c.l.b16 %v252
      %v338 = vunpack.c.l.b16 %v253
      %v339 = vunpack.c.l.b16 %v254
      %v340 = vunpack.c.l.b16 %v255
      %v341 = vunpack.c.l.b16 %v256
      %v342 = vunpack.c.l.b16 %v257
      %v343 = vunpack.c.l.b16 %v258
      %v344 = vunpack.c.l.b16 %v259
      %v345 = vunpack.c.l.b16 %v260
      %v346 = vpack.c.b16 %v331, %v330
      %v347 = vpack.c.b16 %v333, %v332
      %v348 = vpack.c.b16 %v335, %v334
      %v349 = vpack.c.b16 %v337, %v336
      %v350 = vpack.c.b16 %v339, %v338
      %v351 = vpack.c.b16 %v341, %v340
      %v352 = vpack.c.b16 %v343, %v342
      %v353 = vpack.c.b16 %v345, %v344
      %362 = vmatprep.subr.bf16.mxu0 0
      %363 = vmatpush1.bf16.msra.mxu0 %v346
      %364 = vmatprep.subr.bf16.mxu0 0
      %365 = vmatpush1.bf16.msra.mxu0 %v347
      %366 = vmatprep.subr.bf16.mxu0 0
      %367 = vmatpush1.bf16.msra.mxu0 %v348
      %368 = vmatprep.subr.bf16.mxu0 0
      %369 = vmatpush1.bf16.msra.mxu0 %v349
      %370 = vmatprep.subr.bf16.mxu0 0
      %371 = vmatpush1.bf16.msra.mxu0 %v350
      %372 = vmatprep.subr.bf16.mxu0 0
      %373 = vmatpush1.bf16.msra.mxu0 %v351
      %374 = vmatprep.subr.bf16.mxu0 0
      %375 = vmatpush1.bf16.msra.mxu0 %v352
      %376 = vmatprep.subr.bf16.mxu0 0
      %377 = vmatpush1.bf16.msra.mxu0 %v353
      %378 = vmatprep.subr.bf16.mxu0 0
      %379 = vmatpush1.bf16.msra.mxu0 0
      %380 = vmatprep.subr.bf16.mxu0 0
      %381 = vmatpush1.bf16.msra.mxu0 0
      %382 = vmatprep.subr.bf16.mxu0 0
      %383 = vmatpush1.bf16.msra.mxu0 0
      %384 = vmatprep.subr.bf16.mxu0 0
      %385 = vmatpush1.bf16.msra.mxu0 0
      %386 = vmatprep.subr.bf16.mxu0 0
      %387 = vmatpush1.bf16.msra.mxu0 0
      %388 = vmatprep.subr.bf16.mxu0 0
      %389 = vmatpush1.bf16.msra.mxu0 0
      %390 = vmatprep.subr.bf16.mxu0 0
      %391 = vmatpush1.bf16.msra.mxu0 0
      %392 = vmatprep.subr.bf16.mxu0 0
      %393 = vmatpush1.bf16.msra.mxu0 0
      %394 = vmatprep.mubr.bf16.mxu0 0
      %395 = vmatmul.mubr.bf16.gmra.mrb[0].mxu0 %v298
      %v396 = vpop.f32.mrb[0].mxu0
      %v397 = vadd.f32 %v265, %v396
      %v398 = vpop.f32.mrb[0].mxu0
      %v399 = vpop.f32.mrb[0].mxu0
      %v400 = vadd.f32 %v265, %v399
      %v401 = vpop.f32.mrb[0].mxu0
      %402 = vmatprep.mubr.bf16.mxu0 0
      %403 = vmatmul.mubr.bf16.gmra.mrb[0].mxu0 %v299
      %v404 = vpop.f32.mrb[0].mxu0
      %v405 = vadd.f32 %v265, %v404
      %v406 = vpop.f32.mrb[0].mxu0
      %v407 = vpop.f32.mrb[0].mxu0
      %v408 = vadd.f32 %v265, %v407
      %v409 = vpop.f32.mrb[0].mxu0
      %410 = vmatprep.mubr.bf16.mxu0 0
      %411 = vmatmul.mubr.bf16.gmra.mrb[0].mxu0 %v300
      %v412 = vpop.f32.mrb[0].mxu0
      %v413 = vadd.f32 %v265, %v412
      %v414 = vpop.f32.mrb[0].mxu0
      %v415 = vpop.f32.mrb[0].mxu0
      %v416 = vadd.f32 %v265, %v415
      %v417 = vpop.f32.mrb[0].mxu0
      %418 = vmatprep.mubr.bf16.mxu0 0
      %419 = vmatmul.mubr.bf16.gmra.mrb[0].mxu0 %v301
      %v420 = vpop.f32.mrb[0].mxu0
      %v421 = vadd.f32 %v265, %v420
      %v422 = vpop.f32.mrb[0].mxu0
      %v423 = vpop.f32.mrb[0].mxu0
      %v424 = vadd.f32 %v265, %v423
      %v425 = vpop.f32.mrb[0].mxu0
      %426 = vmatprep.mubr.bf16.mxu0 0
      %427 = vmatmul.mubr.bf16.gmra.mrb[0].mxu0 %v302
      %v428 = vpop.f32.mrb[0].mxu0
      %v429 = vadd.f32 %v265, %v428
      %v430 = vpop.f32.mrb[0].mxu0
      %v431 = vpop.f32.mrb[0].mxu0
      %v432 = vadd.f32 %v265, %v431
      %v433 = vpop.f32.mrb[0].mxu0
      %434 = vmatprep.mubr.bf16.mxu0 0
      %435 = vmatmul.mubr.bf16.gmra.mrb[0].mxu0 %v303
      %v436 = vpop.f32.mrb[0].mxu0
      %v437 = vadd.f32 %v265, %v436
      %v438 = vpop.f32.mrb[0].mxu0
      %v439 = vpop.f32.mrb[0].mxu0
      %v440 = vadd.f32 %v265, %v439
      %v441 = vpop.f32.mrb[0].mxu0
      %442 = vmatprep.mubr.bf16.mxu0 0
      %443 = vmatmul.mubr.bf16.gmra.mrb[0].mxu0 %v304
      %v444 = vpop.f32.mrb[0].mxu0
      %v445 = vadd.f32 %v265, %v444
      %v446 = vpop.f32.mrb[0].mxu0
      %v447 = vpop.f32.mrb[0].mxu0
      %v448 = vadd.f32 %v265, %v447
      %v449 = vpop.f32.mrb[0].mxu0
      %450 = vmatprep.mubr.bf16.mxu0 0
      %451 = vmatmul.mubr.bf16.gmra.mrb[0].mxu0 %v305
      %v452 = vpop.f32.mrb[0].mxu0
      %v453 = vadd.f32 %v265, %v452
      %v454 = vpop.f32.mrb[0].mxu0
      %v455 = vpop.f32.mrb[0].mxu0
      %v456 = vadd.f32 %v265, %v455
      %v457 = vpop.f32.mrb[0].mxu0
      %458 = vdwg.mxu0
      %v459 = vpack.c.bf16 %v400, %v397
      %v460 = vpack.c.bf16 %v408, %v405
      %v461 = vpack.c.bf16 %v416, %v413
      %v462 = vpack.c.bf16 %v424, %v421
      %v463 = vpack.c.bf16 %v432, %v429
      %v464 = vpack.c.bf16 %v440, %v437
      %v465 = vpack.c.bf16 %v448, %v445
      %v466 = vpack.c.bf16 %v456, %v453
      %v467 = vld [vmem:[%s3] sm:$0xf]
      %v468 = vld [vmem:[%s3 + $0x4] sm:$0xf]
      %v469 = vld [vmem:[%s3 + $0x8] sm:$0xf]
      %v470 = vld [vmem:[%s3 + $0xc] sm:$0xf]
      %v471 = vld [vmem:[%s3 + $0x10] sm:$0xf]
      %v472 = vld [vmem:[%s3 + $0x14] sm:$0xf]
      %v473 = vld [vmem:[%s3 + $0x18] sm:$0xf]
      %v474 = vld [vmem:[%s3 + $0x1c] sm:$0xf]
      %v475 = vld [vmem:[%s3 + $0x20] sm:$0xf]
      %v476 = vld [vmem:[%s3 + $0x24] sm:$0xf]
      %v477 = vld [vmem:[%s3 + $0x28] sm:$0xf]
      %v478 = vld [vmem:[%s3 + $0x2c] sm:$0xf]
      %v479 = vld [vmem:[%s3 + $0x30] sm:$0xf]
      %v480 = vld [vmem:[%s3 + $0x34] sm:$0xf]
      %v481 = vld [vmem:[%s3 + $0x38] sm:$0xf]
      %v482 = vld [vmem:[%s3 + $0x3c] sm:$0xf]
      %v483 = vld [vmem:[%s1 + $0x1] sm:$0x1]
      %v484 = vlaneseq
      %v485 = vshrl.u32 %v484, 7
      %v486 = vsub.s32 0, %v485
      %v487 = vrot.slane %v483, %v486
      %v504 = vunpack.c.l.b16 %v467
      %v505 = vunpack.c.l.b16 %v468
      %v506 = vunpack.c.l.b16 %v469
      %v507 = vunpack.c.l.b16 %v470
      %v508 = vunpack.c.l.b16 %v471
      %v509 = vunpack.c.l.b16 %v472
      %v510 = vunpack.c.l.b16 %v473
      %v511 = vunpack.c.l.b16 %v474
      %v512 = vunpack.c.l.b16 %v475
      %v513 = vunpack.c.l.b16 %v476
      %v514 = vunpack.c.l.b16 %v477
      %v515 = vunpack.c.l.b16 %v478
      %v516 = vunpack.c.l.b16 %v479
      %v517 = vunpack.c.l.b16 %v480
      %v518 = vunpack.c.l.b16 %v481
      %v519 = vunpack.c.l.b16 %v482
      %v520 = vpack.c.b16 %v505, %v504
      %v521 = vpack.c.b16 %v507, %v506
      %v522 = vpack.c.b16 %v509, %v508
      %v523 = vpack.c.b16 %v511, %v510
      %v524 = vpack.c.b16 %v513, %v512
      %v525 = vpack.c.b16 %v515, %v514
      %v526 = vpack.c.b16 %v517, %v516
      %v527 = vpack.c.b16 %v519, %v518
      %536 = vmatprep.subr.bf16.mxu0 0
      %537 = vmatpush1.bf16.msra.mxu0 %v520
      %538 = vmatprep.subr.bf16.mxu0 0
      %539 = vmatpush1.bf16.msra.mxu0 %v521
      %540 = vmatprep.subr.bf16.mxu0 0
      %541 = vmatpush1.bf16.msra.mxu0 %v522
      %542 = vmatprep.subr.bf16.mxu0 0
      %543 = vmatpush1.bf16.msra.mxu0 %v523
      %544 = vmatprep.subr.bf16.mxu0 0
      %545 = vmatpush1.bf16.msra.mxu0 %v524
      %546 = vmatprep.subr.bf16.mxu0 0
      %547 = vmatpush1.bf16.msra.mxu0 %v525
      %548 = vmatprep.subr.bf16.mxu0 0
      %549 = vmatpush1.bf16.msra.mxu0 %v526
      %550 = vmatprep.subr.bf16.mxu0 0
      %551 = vmatpush1.bf16.msra.mxu0 %v527
      %552 = vmatprep.subr.bf16.mxu0 0
      %553 = vmatpush1.bf16.msra.mxu0 0
      %554 = vmatprep.subr.bf16.mxu0 0
      %555 = vmatpush1.bf16.msra.mxu0 0
      %556 = vmatprep.subr.bf16.mxu0 0
      %557 = vmatpush1.bf16.msra.mxu0 0
      %558 = vmatprep.subr.bf16.mxu0 0
      %559 = vmatpush1.bf16.msra.mxu0 0
      %560 = vmatprep.subr.bf16.mxu0 0
      %561 = vmatpush1.bf16.msra.mxu0 0
      %562 = vmatprep.subr.bf16.mxu0 0
      %563 = vmatpush1.bf16.msra.mxu0 0
      %564 = vmatprep.subr.bf16.mxu0 0
      %565 = vmatpush1.bf16.msra.mxu0 0
      %566 = vmatprep.subr.bf16.mxu0 0
      %567 = vmatpush1.bf16.msra.mxu0 0
      %568 = vmatprep.mubr.bf16.mxu0 0
      %569 = vmatmul.mubr.bf16.gmra.mrb[0].mxu0 %v459
      %v570 = vpop.f32.mrb[0].mxu0
      %v571 = vadd.f32 %v487, %v570
      %v572 = vpop.f32.mrb[0].mxu0
      %v573 = vpop.f32.mrb[0].mxu0
      %v574 = vadd.f32 %v487, %v573
      %v575 = vpop.f32.mrb[0].mxu0
      %576 = vmatprep.mubr.bf16.mxu0 0
      %577 = vmatmul.mubr.bf16.gmra.mrb[0].mxu0 %v460
      %v578 = vpop.f32.mrb[0].mxu0
      %v579 = vadd.f32 %v487, %v578
      %v580 = vpop.f32.mrb[0].mxu0
      %v581 = vpop.f32.mrb[0].mxu0
      %v582 = vadd.f32 %v487, %v581
      %v583 = vpop.f32.mrb[0].mxu0
      %584 = vmatprep.mubr.bf16.mxu0 0
      %585 = vmatmul.mubr.bf16.gmra.mrb[0].mxu0 %v461
      %v586 = vpop.f32.mrb[0].mxu0
      %v587 = vadd.f32 %v487, %v586
      %v588 = vpop.f32.mrb[0].mxu0
      %v589 = vpop.f32.mrb[0].mxu0
      %v590 = vadd.f32 %v487, %v589
      %v591 = vpop.f32.mrb[0].mxu0
      %592 = vmatprep.mubr.bf16.mxu0 0
      %593 = vmatmul.mubr.bf16.gmra.mrb[0].mxu0 %v462
      %v594 = vpop.f32.mrb[0].mxu0
      %v595 = vadd.f32 %v487, %v594
      %v596 = vpop.f32.mrb[0].mxu0
      %v597 = vpop.f32.mrb[0].mxu0
      %v598 = vadd.f32 %v487, %v597
      %v599 = vpop.f32.mrb[0].mxu0
      %600 = vmatprep.mubr.bf16.mxu0 0
      %601 = vmatmul.mubr.bf16.gmra.mrb[0].mxu0 %v463
      %v602 = vpop.f32.mrb[0].mxu0
      %v603 = vadd.f32 %v487, %v602
      %v604 = vpop.f32.mrb[0].mxu0
      %v605 = vpop.f32.mrb[0].mxu0
      %v606 = vadd.f32 %v487, %v605
      %v607 = vpop.f32.mrb[0].mxu0
      %608 = vmatprep.mubr.bf16.mxu0 0
      %609 = vmatmul.mubr.bf16.gmra.mrb[0].mxu0 %v464
      %v610 = vpop.f32.mrb[0].mxu0
      %v611 = vadd.f32 %v487, %v610
      %v612 = vpop.f32.mrb[0].mxu0
      %v613 = vpop.f32.mrb[0].mxu0
      %v614 = vadd.f32 %v487, %v613
      %v615 = vpop.f32.mrb[0].mxu0
      %616 = vmatprep.mubr.bf16.mxu0 0
      %617 = vmatmul.mubr.bf16.gmra.mrb[0].mxu0 %v465
      %v618 = vpop.f32.mrb[0].mxu0
      %v619 = vadd.f32 %v487, %v618
      %v620 = vpop.f32.mrb[0].mxu0
      %v621 = vpop.f32.mrb[0].mxu0
      %v622 = vadd.f32 %v487, %v621
      %v623 = vpop.f32.mrb[0].mxu0
      %624 = vmatprep.mubr.bf16.mxu0 0
      %625 = vmatmul.mubr.bf16.gmra.mrb[0].mxu0 %v466
      %v626 = vpop.f32.mrb[0].mxu0
      %v627 = vadd.f32 %v487, %v626
      %v628 = vpop.f32.mrb[0].mxu0
      %v629 = vpop.f32.mrb[0].mxu0
      %v630 = vadd.f32 %v487, %v629
      %v631 = vpop.f32.mrb[0].mxu0
      %632 = vdwg.mxu0
      %v633 = vpack.c.bf16 %v574, %v571
      %v634 = vpack.c.bf16 %v582, %v579
      %v635 = vpack.c.bf16 %v590, %v587
      %v636 = vpack.c.bf16 %v598, %v595
      %v637 = vpack.c.bf16 %v606, %v603
      %v638 = vpack.c.bf16 %v614, %v611
      %v639 = vpack.c.bf16 %v622, %v619
      %v640 = vpack.c.bf16 %v630, %v627
      %v641 = vld [vmem:[%s4] sm:$0xf]
      %v642 = vld [vmem:[%s4 + $0x4] sm:$0xf]
      %v643 = vld [vmem:[%s4 + $0x8] sm:$0xf]
      %v644 = vld [vmem:[%s4 + $0xc] sm:$0xf]
      %v645 = vld [vmem:[%s4 + $0x10] sm:$0xf]
      %v646 = vld [vmem:[%s4 + $0x14] sm:$0xf]
      %v647 = vld [vmem:[%s4 + $0x18] sm:$0xf]
      %v648 = vld [vmem:[%s4 + $0x1c] sm:$0xf]
      %v649 = vld [vmem:[%s4 + $0x20] sm:$0xf]
      %v650 = vld [vmem:[%s4 + $0x24] sm:$0xf]
      %v651 = vld [vmem:[%s4 + $0x28] sm:$0xf]
      %v652 = vld [vmem:[%s4 + $0x2c] sm:$0xf]
      %v653 = vld [vmem:[%s4 + $0x30] sm:$0xf]
      %v654 = vld [vmem:[%s4 + $0x34] sm:$0xf]
      %v655 = vld [vmem:[%s4 + $0x38] sm:$0xf]
      %v656 = vld [vmem:[%s4 + $0x3c] sm:$0xf]
      %v657 = vld [vmem:[%s1 + $0x2] sm:$0x1]
      %v658 = vlaneseq
      %v659 = vshrl.u32 %v658, 7
      %v660 = vsub.s32 0, %v659
      %v661 = vrot.slane %v657, %v660
      %v678 = vunpack.c.l.b16 %v641
      %v679 = vunpack.c.l.b16 %v642
      %v680 = vunpack.c.l.b16 %v643
      %v681 = vunpack.c.l.b16 %v644
      %v682 = vunpack.c.l.b16 %v645
      %v683 = vunpack.c.l.b16 %v646
      %v684 = vunpack.c.l.b16 %v647
      %v685 = vunpack.c.l.b16 %v648
      %v686 = vunpack.c.l.b16 %v649
      %v687 = vunpack.c.l.b16 %v650
      %v688 = vunpack.c.l.b16 %v651
      %v689 = vunpack.c.l.b16 %v652
      %v690 = vunpack.c.l.b16 %v653
      %v691 = vunpack.c.l.b16 %v654
      %v692 = vunpack.c.l.b16 %v655
      %v693 = vunpack.c.l.b16 %v656
      %v694 = vpack.c.b16 %v679, %v678
      %v695 = vpack.c.b16 %v681, %v680
      %v696 = vpack.c.b16 %v683, %v682
      %v697 = vpack.c.b16 %v685, %v684
      %v698 = vpack.c.b16 %v687, %v686
      %v699 = vpack.c.b16 %v689, %v688
      %v700 = vpack.c.b16 %v691, %v690
      %v701 = vpack.c.b16 %v693, %v692
      %710 = vmatprep.subr.bf16.mxu0 0
      %711 = vmatpush1.bf16.msra.mxu0 %v694
      %712 = vmatprep.subr.bf16.mxu0 0
      %713 = vmatpush1.bf16.msra.mxu0 %v695
      %714 = vmatprep.subr.bf16.mxu0 0
      %715 = vmatpush1.bf16.msra.mxu0 %v696
      %716 = vmatprep.subr.bf16.mxu0 0
      %717 = vmatpush1.bf16.msra.mxu0 %v697
      %718 = vmatprep.subr.bf16.mxu0 0
      %719 = vmatpush1.bf16.msra.mxu0 %v698
      %720 = vmatprep.subr.bf16.mxu0 0
      %721 = vmatpush1.bf16.msra.mxu0 %v699
      %722 = vmatprep.subr.bf16.mxu0 0
      %723 = vmatpush1.bf16.msra.mxu0 %v700
      %724 = vmatprep.subr.bf16.mxu0 0
      %725 = vmatpush1.bf16.msra.mxu0 %v701
      %726 = vmatprep.subr.bf16.mxu0 0
      %727 = vmatpush1.bf16.msra.mxu0 0
      %728 = vmatprep.subr.bf16.mxu0 0
      %729 = vmatpush1.bf16.msra.mxu0 0
      %730 = vmatprep.subr.bf16.mxu0 0
      %731 = vmatpush1.bf16.msra.mxu0 0
      %732 = vmatprep.subr.bf16.mxu0 0
      %733 = vmatpush1.bf16.msra.mxu0 0
      %734 = vmatprep.subr.bf16.mxu0 0
      %735 = vmatpush1.bf16.msra.mxu0 0
      %736 = vmatprep.subr.bf16.mxu0 0
      %737 = vmatpush1.bf16.msra.mxu0 0
      %738 = vmatprep.subr.bf16.mxu0 0
      %739 = vmatpush1.bf16.msra.mxu0 0
      %740 = vmatprep.subr.bf16.mxu0 0
      %741 = vmatpush1.bf16.msra.mxu0 0
      %742 = vmatprep.mubr.bf16.mxu0 0
      %743 = vmatmul.mubr.bf16.gmra.mrb[0].mxu0 %v633
      %v744 = vpop.f32.mrb[0].mxu0
      %v745 = vadd.f32 %v661, %v744
      %v746 = vpop.f32.mrb[0].mxu0
      %v747 = vpop.f32.mrb[0].mxu0
      %v748 = vadd.f32 %v661, %v747
      %v749 = vpop.f32.mrb[0].mxu0
      %750 = vmatprep.mubr.bf16.mxu0 0
      %751 = vmatmul.mubr.bf16.gmra.mrb[0].mxu0 %v634
      %v752 = vpop.f32.mrb[0].mxu0
      %v753 = vadd.f32 %v661, %v752
      %v754 = vpop.f32.mrb[0].mxu0
      %v755 = vpop.f32.mrb[0].mxu0
      %v756 = vadd.f32 %v661, %v755
      %v757 = vpop.f32.mrb[0].mxu0
      %758 = vmatprep.mubr.bf16.mxu0 0
      %759 = vmatmul.mubr.bf16.gmra.mrb[0].mxu0 %v635
      %v760 = vpop.f32.mrb[0].mxu0
      %v761 = vadd.f32 %v661, %v760
      %v762 = vpop.f32.mrb[0].mxu0
      %v763 = vpop.f32.mrb[0].mxu0
      %v764 = vadd.f32 %v661, %v763
      %v765 = vpop.f32.mrb[0].mxu0
      %766 = vmatprep.mubr.bf16.mxu0 0
      %767 = vmatmul.mubr.bf16.gmra.mrb[0].mxu0 %v636
      %v768 = vpop.f32.mrb[0].mxu0
      %v769 = vadd.f32 %v661, %v768
      %v770 = vpop.f32.mrb[0].mxu0
      %v771 = vpop.f32.mrb[0].mxu0
      %v772 = vadd.f32 %v661, %v771
      %v773 = vpop.f32.mrb[0].mxu0
      %774 = vmatprep.mubr.bf16.mxu0 0
      %775 = vmatmul.mubr.bf16.gmra.mrb[0].mxu0 %v637
      %v776 = vpop.f32.mrb[0].mxu0
      %v777 = vadd.f32 %v661, %v776
      %v778 = vpop.f32.mrb[0].mxu0
      %v779 = vpop.f32.mrb[0].mxu0
      %v780 = vadd.f32 %v661, %v779
      %v781 = vpop.f32.mrb[0].mxu0
      %782 = vmatprep.mubr.bf16.mxu0 0
      %783 = vmatmul.mubr.bf16.gmra.mrb[0].mxu0 %v638
      %v784 = vpop.f32.mrb[0].mxu0
      %v785 = vadd.f32 %v661, %v784
      %v786 = vpop.f32.mrb[0].mxu0
      %v787 = vpop.f32.mrb[0].mxu0
      %v788 = vadd.f32 %v661, %v787
      %v789 = vpop.f32.mrb[0].mxu0
      %790 = vmatprep.mubr.bf16.mxu0 0
      %791 = vmatmul.mubr.bf16.gmra.mrb[0].mxu0 %v639
      %v792 = vpop.f32.mrb[0].mxu0
      %v793 = vadd.f32 %v661, %v792
      %v794 = vpop.f32.mrb[0].mxu0
      %v795 = vpop.f32.mrb[0].mxu0
      %v796 = vadd.f32 %v661, %v795
      %v797 = vpop.f32.mrb[0].mxu0
      %798 = vmatprep.mubr.bf16.mxu0 0
      %799 = vmatmul.mubr.bf16.gmra.mrb[0].mxu0 %v640
      %v800 = vpop.f32.mrb[0].mxu0
      %v801 = vadd.f32 %v661, %v800
      %v802 = vpop.f32.mrb[0].mxu0
      %v803 = vpop.f32.mrb[0].mxu0
      %v804 = vadd.f32 %v661, %v803
      %v805 = vpop.f32.mrb[0].mxu0
      %806 = vdwg.mxu0
      %807 = vst [vmem:[%s226] sm:$0xff] %v745
      %808 = vst [vmem:[%s226 + $0x8] sm:$0xff] %v748
      %809 = vst [vmem:[%s226 + $0x10] sm:$0xff] %v753
      %810 = vst [vmem:[%s226 + $0x18] sm:$0xff] %v756
      %811 = vst [vmem:[%s226 + $0x20] sm:$0xff] %v761
      %812 = vst [vmem:[%s226 + $0x28] sm:$0xff] %v764
      %813 = vst [vmem:[%s226 + $0x30] sm:$0xff] %v769
      %814 = vst [vmem:[%s226 + $0x38] sm:$0xff] %v772
      %815 = vst [vmem:[%s226 + $0x40] sm:$0xff] %v777
      %816 = vst [vmem:[%s226 + $0x48] sm:$0xff] %v780
      %817 = vst [vmem:[%s226 + $0x50] sm:$0xff] %v785
      %818 = vst [vmem:[%s226 + $0x58] sm:$0xff] %v788
      %819 = vst [vmem:[%s226 + $0x60] sm:$0xff] %v793
      %820 = vst [vmem:[%s226 + $0x68] sm:$0xff] %v796
      %821 = vst [vmem:[%s226 + $0x70] sm:$0xff] %v801
      %822 = vst [vmem:[%s226 + $0x78] sm:$0xff] %v804
      %s823 = smul.u32 16, %s16
      %p824 = scmp.lt.s32.totalorder %s823, 31
      %s825 = scalar_select %p824, %s823, 31
      %s826 = smul.addr %s825, 8
      %s827 = scalar_lea.vmem %s5, %s826
      // Predicated region
      $region41: #{mlp_forward.1} parent=39 // pred_check
        %p828 = pneg %p144
      $region42: #{mlp_forward.1} parent=39 // pred_check_branch
        %830 = sbr.rel (%p828) target = $region44
      $region43: #{mlp_forward.1} parent=39 // pred_region
        %s831 = smul.u32 16, %s16
      $region44: #{mlp_forward.1} parent=39 // pred_fallthru
        _
    $region40: #{mlp_forward.1} parent=5 // pred_fallthru
      _
    %p832 = scmp.le.s32.totalorder 2, %s11
    // Predicated region
    $region45: #{mlp_forward.1} parent=5 // pred_check
      %p833 = pneg %p832
    $region46: #{mlp_forward.1} parent=5 // pred_check_branch
      %835 = sbr.rel (%p833) target = $region48
    $region47: #{mlp_forward.1} parent=5 // pred_region
      %s836 = ssub.s32 %s11, 2
      // Predicated region
      $region49: #{mlp_forward.1} parent=47 // pred_check
        %p837 = pneg %p150
      $region50: #{mlp_forward.1} parent=47 // pred_check_branch
        %839 = sbr.rel (%p837) target = $region52
      $region51: #{mlp_forward.1} parent=47 // pred_region
        %s840 = smul.u32 16, %s17
        %p841 = scmp.lt.s32.totalorder %s840, 31
        %s842 = scalar_select %p841, %s840, 31
        %s843 = smul.addr %s842, 8
        %s844 = scalar_lea.vmem %s5, %s843
      $region52: #{mlp_forward.1} parent=47 // pred_fallthru
        _
    $region48: #{mlp_forward.1} parent=5 // pred_fallthru
      _
  $region6: #{mlp_forward.1} parent=0 // loop_footer
    %s15 = sadd.s32 1, %s11
  $region7: #{mlp_forward.1} parent=0 // loop_footer_branch
    %10 = sbr.rel target = $region3
  $region8: #{mlp_forward.1} parent=0 // loop_exit
    _

</llo_original>
